<compile_context>
chip_gen: v6e
topology: v6e:2x2x1
jax: 0.10.0
libtpu: 0.0.40
codegen_flags: <defaults>
</compile_context>

<pallas_src>
import functools

import jax
import jax.numpy as jnp
from jax.experimental import pallas as pl
from jax.experimental.pallas import tpu as pltpu

HIDDEN = 20   # hidden_dim=20 as in the PyTorch module
_LANE = 128   # TPU lane width


def _round_up(x, m):
    return ((x + m - 1) // m) * m


# -----------------------------------------------------------------------------
# Parameter packing: one tiny f32 slab, shape (H, 4 + 2H):
#   col 0            : w1[:, 0]   (Linear(1->H) weight, torch (out,in))
#   col 1            : b1
#   cols [2, 2+H)    : w2         (Linear(H->H) weight, torch (out,in))
#   col 2+H          : b2
#   cols [3+H, 3+2H) : rows 0..1 hold w3 (Linear(H->2) weight, torch (out,in))
#   col 3+2H         : rows 0..1 hold b3
# Build it ONCE (outside the per-step hot path) and reuse it for every forward.
# -----------------------------------------------------------------------------
def pack_params(params):
    H = params["w1"].shape[0]
    C = 4 + 2 * H
    slab = jnp.zeros((H, C), jnp.float32)
    slab = slab.at[:, 0].set(params["w1"][:, 0].astype(jnp.float32))
    slab = slab.at[:, 1].set(params["b1"].astype(jnp.float32))
    slab = slab.at[:, 2:2 + H].set(params["w2"].astype(jnp.float32))
    slab = slab.at[:, 2 + H].set(params["b2"].astype(jnp.float32))
    slab = slab.at[0:2, 3 + H:3 + 2 * H].set(params["w3"].astype(jnp.float32))
    slab = slab.at[0:2, 3 + 2 * H].set(params["b3"].astype(jnp.float32))
    return slab


def pinn_mlp_kernel(t_ref, slab_ref, o_ref, *, hidden_dim, layer2_on_mxu):
    """Transposed-layout MLP: features on sublanes, batch samples on lanes.

    t_ref   : (1, TN)          time samples for this tile
    slab_ref: (H, 4+2H)        packed weights/biases, grid-resident
    o_ref   : (2, TN)          lane-dense output block
    """
    H = hidden_dim
    t = t_ref[...]                                     # (1, TN)

    # Layer 1: Linear(1 -> H) + Tanh.  Input dim 1 => broadcasted outer product
    # on the VPU, tanh on the EUP.
    w1 = slab_ref[:, 0:1]                              # (H, 1)
    b1 = slab_ref[:, 1:2]                              # (H, 1)
    h1 = jnp.tanh(w1 * t + b1)                         # (H, TN)

    # Layer 2: Linear(H -> H) + Tanh.
    b2 = slab_ref[:, 2 + H:3 + H]                      # (H, 1)
    if layer2_on_mxu:
        w2 = slab_ref[:, 2:2 + H]                      # (H, H)
        z2 = jnp.dot(w2, h1, preferred_element_type=jnp.float32) + b2
    else:
        # 20 unrolled broadcast FMAs on the VALU: the VPU has 4 free slots/cycle
        # under the EUP-bound tanh work, so this is free filler and avoids the
        # f32 multi-pass MXU + MRF-drain path on v5e/v6e.
        z2 = slab_ref[:, 2:3] * h1[0:1, :] + b2        # k = 0, bias fused in
        for k in range(1, H):                          # static slices, unrolled
            z2 = z2 + slab_ref[:, 2 + k:3 + k] * h1[k:k + 1, :]
    h2 = jnp.tanh(z2)                                  # (H, TN)

    # Layer 3: Linear(H -> 2), no activation.  Tiny dot, lane-dense store.
    w3 = slab_ref[0:2, 3 + H:3 + 2 * H]                # (2, H)
    b3 = slab_ref[0:2, 3 + 2 * H:4 + 2 * H]            # (2, 1)
    o_ref[...] = jnp.dot(w3, h2, preferred_element_type=jnp.float32) + b3


def _detect_num_tensorcores():
    """Best-effort count of TensorCores sharing one Pallas grid (megacore/v7x)."""
    try:
        kind = jax.devices()[0].device_kind.lower()
    except Exception:
        return 1
    if ("v7" in kind) or ("v4" in kind) or ("v5p" in kind):
        return 2
    return 1


def _choose_tile(n, max_tile_n, num_cores):
    """Lane-aligned batch tile.  1-TC chips: one big tile (grid=(1,)) whenever it
    fits under max_tile_n.  Multi-TC chips: split so the 'parallel' grid has at
    least `num_cores` steps (weights are grid-resident, so the extra tiny weight
    DMA per core is the only cost)."""
    n_lane = _round_up(n, _LANE)
    max_tile = max(_LANE, _round_up(int(max_tile_n), _LANE))
    if num_cores >= 2 and n_lane > _LANE:
        per_core = _round_up(-(-n_lane // num_cores), _LANE)
        tile = min(per_core, max_tile)
    else:
        tile = min(n_lane, max_tile)
    return tile


def projectile_pinn_forward(t, param_slab, *, max_tile_n=8192, num_cores=None,
                            layer2_on_mxu=False, out_layout="n2"):
    """Forward pass of ProjectilePINN with a Pallas TPU kernel.

    t          : (N, 1) float32 time samples (any N; no padding needed).
    param_slab : (H, 4+2H) slab from pack_params().
    out_layout : "n2" (default, matches torch: (N,2)) or "2n" to get the kernel's
                 natural lane-dense (2,N) and defer the transpose to the consumer.
    """
    N = t.shape[0]
    assert t.shape == (N, 1)
    H = param_slab.shape[0]
    assert param_slab.shape == (H, 4 + 2 * H)

    if num_cores is None:
        num_cores = _detect_num_tensorcores()
    tile_n = _choose_tile(N, max_tile_n, num_cores)
    grid = (pl.cdiv(N, tile_n),)

    # (N,1) -> (1,N) is a free row-major reshape; batch goes onto the lane axis.
    # No zero-pad / output slice: Pallas masks the partial edge block's stores,
    # and the kernel never reduces over the lane axis, so padded-lane garbage
    # never reaches valid outputs.
    t_row = t.reshape(1, N).astype(jnp.float32)

    kernel = functools.partial(pinn_mlp_kernel, hidden_dim=H,
                               layer2_on_mxu=layer2_on_mxu)

    out_2n = pl.pallas_call(
        kernel,
        out_shape=jax.ShapeDtypeStruct((2, N), jnp.float32),
        grid_spec=pl.GridSpec(
            grid=grid,
            in_specs=[
                pl.BlockSpec((1, tile_n), lambda i: (0, i)),       # t (1, N)
                pl.BlockSpec((H, 4 + 2 * H), lambda i: (0, 0)),    # weight slab
            ],
            out_specs=pl.BlockSpec((2, tile_n), lambda i: (0, i)),
        ),
        compiler_params=pltpu.CompilerParams(
            dimension_semantics=("parallel",),   # shard batch tiles across TCs
        ),
    )(t_row, param_slab)

    if out_layout == "2n":
        return out_2n
    # Torch forward returns (N, 2); consumers that can use (2, N) should pass
    # out_layout="2n" to skip this extra XLA transpose.
    return out_2n.T


def init_params(key, hidden_dim=HIDDEN):
    """PyTorch nn.Linear default init: U(-1/sqrt(fan_in), 1/sqrt(fan_in)) for both
    weight and bias.  Weights stored in torch (out, in) orientation."""
    k1, k2, k3, k4, k5, k6 = jax.random.split(key, 6)

    def unif(k, shape, fan_in):
        bound = 1.0 / jnp.sqrt(fan_in)
        return jax.random.uniform(k, shape, jnp.float32, -bound, bound)

    return {
        "w1": unif(k1, (hidden_dim, 1), 1.0),
        "b1": unif(k2, (hidden_dim,), 1.0),
        "w2": unif(k3, (hidden_dim, hidden_dim), float(hidden_dim)),
        "b2": unif(k4, (hidden_dim,), float(hidden_dim)),
        "w3": unif(k5, (2, hidden_dim), float(hidden_dim)),
        "b3": unif(k6, (2,), float(hidden_dim)),
    }


def reference_forward(t, p):
    """Plain-JAX reference identical to the PyTorch module (y = x @ W.T + b)."""
    h1 = jnp.tanh(t @ p["w1"].T + p["b1"])
    h2 = jnp.tanh(h1 @ p["w2"].T + p["b2"])
    return h2 @ p["w3"].T + p["b3"]


if __name__ == "__main__":
    key = jax.random.PRNGKey(0)
    pkey, tkey = jax.random.split(key)

    params = init_params(pkey, hidden_dim=HIDDEN)
    slab = pack_params(params)   # built once, reused for every forward call

    # Batch of time samples, shape (N, 1), like t_test = linspace(0, 6, 200) in
    # the original evaluation.  N=200 exercises the masked partial edge block.
    N = 200
    t = jax.random.uniform(tkey, (N, 1), jnp.float32, 0.0, 6.0)
    ref = reference_forward(t, params)

    # Default path: hardware-detected core count (grid=(1,) on 1-TC chips).
    out = projectile_pinn_forward(t, slab)
    out = jax.block_until_ready(out)
    assert out.shape == (N, 2)
    err = float(jnp.max(jnp.abs(out - ref)))
    assert jnp.allclose(out, ref, atol=1e-5, rtol=1e-5), f"max abs err {err}"

    # Also exercise the multi-TensorCore tiling path (>=2 parallel grid steps),
    # as used on megacore / v7x-class parts.
    out2 = projectile_pinn_forward(t, slab, num_cores=2)
    out2 = jax.block_until_ready(out2)
    err2 = float(jnp.max(jnp.abs(out2 - ref)))
    assert jnp.allclose(out2, ref, atol=1e-5, rtol=1e-5), f"max abs err {err2}"

    print("KERNEL_OK")
</pallas_src>

<mosaic_0001>
module attributes {stable_mosaic.version = 11 : i64} {
  func.func @pinn_mlp_kernel(%arg0: i32, %arg1: memref<1x256xf32, #tpu.memory_space<vmem>>, %arg2: memref<20x44xf32, #tpu.memory_space<vmem>>, %arg3: memref<2x256xf32, #tpu.memory_space<vmem>>) attributes {dimension_semantics = [#tpu.dimension_semantics<parallel>], iteration_bounds = array<i64: 1>, scalar_prefetch = 0 : i64, scratch_operands = 0 : i64, tpu.core_type = #tpu.core_type<tc>, window_params = [{transform_indices = @transform_0, window_bounds = array<i64: 1, 256>}, {pipeline_mode = #tpu.pipeline_mode<synchronous>, transform_indices = @transform_1, window_bounds = array<i64: 20, 44>}, {transform_indices = @transform_2, window_bounds = array<i64: 2, 256>}]} {
    %c0 = arith.constant 0 : index
    %c0_0 = arith.constant 0 : index
    %0 = vector.load %arg1[%c0, %c0_0] : memref<1x256xf32, #tpu.memory_space<vmem>>, vector<1x256xf32>
    %c0_1 = arith.constant 0 : index
    %c0_2 = arith.constant 0 : index
    %1 = vector.load %arg2[%c0_1, %c0_2] : memref<20x44xf32, #tpu.memory_space<vmem>>, vector<20x1xf32>
    %c0_3 = arith.constant 0 : index
    %c1 = arith.constant 1 : index
    %2 = vector.load %arg2[%c0_3, %c1] : memref<20x44xf32, #tpu.memory_space<vmem>>, vector<20x1xf32>
    %3 = vector.broadcast %1 : vector<20x1xf32> to vector<20x256xf32>
    %4 = vector.broadcast %0 : vector<1x256xf32> to vector<20x256xf32>
    %5 = arith.mulf %3, %4 : vector<20x256xf32>
    %6 = vector.broadcast %2 : vector<20x1xf32> to vector<20x256xf32>
    %7 = arith.addf %5, %6 : vector<20x256xf32>
    %8 = math.tanh %7 : vector<20x256xf32>
    %c0_4 = arith.constant 0 : index
    %c22 = arith.constant 22 : index
    %9 = vector.load %arg2[%c0_4, %c22] : memref<20x44xf32, #tpu.memory_space<vmem>>, vector<20x1xf32>
    %c0_5 = arith.constant 0 : index
    %c2 = arith.constant 2 : index
    %10 = vector.load %arg2[%c0_5, %c2] : memref<20x44xf32, #tpu.memory_space<vmem>>, vector<20x1xf32>
    %11 = vector.extract_strided_slice %8 {offsets = [0, 0], sizes = [1, 256], strides = [1, 1]} : vector<20x256xf32> to vector<1x256xf32>
    %12 = vector.broadcast %10 : vector<20x1xf32> to vector<20x256xf32>
    %13 = vector.broadcast %11 : vector<1x256xf32> to vector<20x256xf32>
    %14 = arith.mulf %12, %13 : vector<20x256xf32>
    %15 = vector.broadcast %9 : vector<20x1xf32> to vector<20x256xf32>
    %16 = arith.addf %14, %15 : vector<20x256xf32>
    %c0_6 = arith.constant 0 : index
    %c3 = arith.constant 3 : index
    %17 = vector.load %arg2[%c0_6, %c3] : memref<20x44xf32, #tpu.memory_space<vmem>>, vector<20x1xf32>
    %18 = vector.extract_strided_slice %8 {offsets = [1, 0], sizes = [1, 256], strides = [1, 1]} : vector<20x256xf32> to vector<1x256xf32>
    %19 = vector.broadcast %17 : vector<20x1xf32> to vector<20x256xf32>
    %20 = vector.broadcast %18 : vector<1x256xf32> to vector<20x256xf32>
    %21 = arith.mulf %19, %20 : vector<20x256xf32>
    %22 = arith.addf %16, %21 : vector<20x256xf32>
    %c0_7 = arith.constant 0 : index
    %c4 = arith.constant 4 : index
    %23 = vector.load %arg2[%c0_7, %c4] : memref<20x44xf32, #tpu.memory_space<vmem>>, vector<20x1xf32>
    %24 = vector.extract_strided_slice %8 {offsets = [2, 0], sizes = [1, 256], strides = [1, 1]} : vector<20x256xf32> to vector<1x256xf32>
    %25 = vector.broadcast %23 : vector<20x1xf32> to vector<20x256xf32>
    %26 = vector.broadcast %24 : vector<1x256xf32> to vector<20x256xf32>
    %27 = arith.mulf %25, %26 : vector<20x256xf32>
    %28 = arith.addf %22, %27 : vector<20x256xf32>
    %c0_8 = arith.constant 0 : index
    %c5 = arith.constant 5 : index
    %29 = vector.load %arg2[%c0_8, %c5] : memref<20x44xf32, #tpu.memory_space<vmem>>, vector<20x1xf32>
    %30 = vector.extract_strided_slice %8 {offsets = [3, 0], sizes = [1, 256], strides = [1, 1]} : vector<20x256xf32> to vector<1x256xf32>
    %31 = vector.broadcast %29 : vector<20x1xf32> to vector<20x256xf32>
    %32 = vector.broadcast %30 : vector<1x256xf32> to vector<20x256xf32>
    %33 = arith.mulf %31, %32 : vector<20x256xf32>
    %34 = arith.addf %28, %33 : vector<20x256xf32>
    %c0_9 = arith.constant 0 : index
    %c6 = arith.constant 6 : index
    %35 = vector.load %arg2[%c0_9, %c6] : memref<20x44xf32, #tpu.memory_space<vmem>>, vector<20x1xf32>
    %36 = vector.extract_strided_slice %8 {offsets = [4, 0], sizes = [1, 256], strides = [1, 1]} : vector<20x256xf32> to vector<1x256xf32>
    %37 = vector.broadcast %35 : vector<20x1xf32> to vector<20x256xf32>
    %38 = vector.broadcast %36 : vector<1x256xf32> to vector<20x256xf32>
    %39 = arith.mulf %37, %38 : vector<20x256xf32>
    %40 = arith.addf %34, %39 : vector<20x256xf32>
    %c0_10 = arith.constant 0 : index
    %c7 = arith.constant 7 : index
    %41 = vector.load %arg2[%c0_10, %c7] : memref<20x44xf32, #tpu.memory_space<vmem>>, vector<20x1xf32>
    %42 = vector.extract_strided_slice %8 {offsets = [5, 0], sizes = [1, 256], strides = [1, 1]} : vector<20x256xf32> to vector<1x256xf32>
    %43 = vector.broadcast %41 : vector<20x1xf32> to vector<20x256xf32>
    %44 = vector.broadcast %42 : vector<1x256xf32> to vector<20x256xf32>
    %45 = arith.mulf %43, %44 : vector<20x256xf32>
    %46 = arith.addf %40, %45 : vector<20x256xf32>
    %c0_11 = arith.constant 0 : index
    %c8 = arith.constant 8 : index
    %47 = vector.load %arg2[%c0_11, %c8] : memref<20x44xf32, #tpu.memory_space<vmem>>, vector<20x1xf32>
    %48 = vector.extract_strided_slice %8 {offsets = [6, 0], sizes = [1, 256], strides = [1, 1]} : vector<20x256xf32> to vector<1x256xf32>
    %49 = vector.broadcast %47 : vector<20x1xf32> to vector<20x256xf32>
    %50 = vector.broadcast %48 : vector<1x256xf32> to vector<20x256xf32>
    %51 = arith.mulf %49, %50 : vector<20x256xf32>
    %52 = arith.addf %46, %51 : vector<20x256xf32>
    %c0_12 = arith.constant 0 : index
    %c9 = arith.constant 9 : index
    %53 = vector.load %arg2[%c0_12, %c9] : memref<20x44xf32, #tpu.memory_space<vmem>>, vector<20x1xf32>
    %54 = vector.extract_strided_slice %8 {offsets = [7, 0], sizes = [1, 256], strides = [1, 1]} : vector<20x256xf32> to vector<1x256xf32>
    %55 = vector.broadcast %53 : vector<20x1xf32> to vector<20x256xf32>
    %56 = vector.broadcast %54 : vector<1x256xf32> to vector<20x256xf32>
    %57 = arith.mulf %55, %56 : vector<20x256xf32>
    %58 = arith.addf %52, %57 : vector<20x256xf32>
    %c0_13 = arith.constant 0 : index
    %c10 = arith.constant 10 : index
    %59 = vector.load %arg2[%c0_13, %c10] : memref<20x44xf32, #tpu.memory_space<vmem>>, vector<20x1xf32>
    %60 = vector.extract_strided_slice %8 {offsets = [8, 0], sizes = [1, 256], strides = [1, 1]} : vector<20x256xf32> to vector<1x256xf32>
    %61 = vector.broadcast %59 : vector<20x1xf32> to vector<20x256xf32>
    %62 = vector.broadcast %60 : vector<1x256xf32> to vector<20x256xf32>
    %63 = arith.mulf %61, %62 : vector<20x256xf32>
    %64 = arith.addf %58, %63 : vector<20x256xf32>
    %c0_14 = arith.constant 0 : index
    %c11 = arith.constant 11 : index
    %65 = vector.load %arg2[%c0_14, %c11] : memref<20x44xf32, #tpu.memory_space<vmem>>, vector<20x1xf32>
    %66 = vector.extract_strided_slice %8 {offsets = [9, 0], sizes = [1, 256], strides = [1, 1]} : vector<20x256xf32> to vector<1x256xf32>
    %67 = vector.broadcast %65 : vector<20x1xf32> to vector<20x256xf32>
    %68 = vector.broadcast %66 : vector<1x256xf32> to vector<20x256xf32>
    %69 = arith.mulf %67, %68 : vector<20x256xf32>
    %70 = arith.addf %64, %69 : vector<20x256xf32>
    %c0_15 = arith.constant 0 : index
    %c12 = arith.constant 12 : index
    %71 = vector.load %arg2[%c0_15, %c12] : memref<20x44xf32, #tpu.memory_space<vmem>>, vector<20x1xf32>
    %72 = vector.extract_strided_slice %8 {offsets = [10, 0], sizes = [1, 256], strides = [1, 1]} : vector<20x256xf32> to vector<1x256xf32>
    %73 = vector.broadcast %71 : vector<20x1xf32> to vector<20x256xf32>
    %74 = vector.broadcast %72 : vector<1x256xf32> to vector<20x256xf32>
    %75 = arith.mulf %73, %74 : vector<20x256xf32>
    %76 = arith.addf %70, %75 : vector<20x256xf32>
    %c0_16 = arith.constant 0 : index
    %c13 = arith.constant 13 : index
    %77 = vector.load %arg2[%c0_16, %c13] : memref<20x44xf32, #tpu.memory_space<vmem>>, vector<20x1xf32>
    %78 = vector.extract_strided_slice %8 {offsets = [11, 0], sizes = [1, 256], strides = [1, 1]} : vector<20x256xf32> to vector<1x256xf32>
    %79 = vector.broadcast %77 : vector<20x1xf32> to vector<20x256xf32>
    %80 = vector.broadcast %78 : vector<1x256xf32> to vector<20x256xf32>
    %81 = arith.mulf %79, %80 : vector<20x256xf32>
    %82 = arith.addf %76, %81 : vector<20x256xf32>
    %c0_17 = arith.constant 0 : index
    %c14 = arith.constant 14 : index
    %83 = vector.load %arg2[%c0_17, %c14] : memref<20x44xf32, #tpu.memory_space<vmem>>, vector<20x1xf32>
    %84 = vector.extract_strided_slice %8 {offsets = [12, 0], sizes = [1, 256], strides = [1, 1]} : vector<20x256xf32> to vector<1x256xf32>
    %85 = vector.broadcast %83 : vector<20x1xf32> to vector<20x256xf32>
    %86 = vector.broadcast %84 : vector<1x256xf32> to vector<20x256xf32>
    %87 = arith.mulf %85, %86 : vector<20x256xf32>
    %88 = arith.addf %82, %87 : vector<20x256xf32>
    %c0_18 = arith.constant 0 : index
    %c15 = arith.constant 15 : index
    %89 = vector.load %arg2[%c0_18, %c15] : memref<20x44xf32, #tpu.memory_space<vmem>>, vector<20x1xf32>
    %90 = vector.extract_strided_slice %8 {offsets = [13, 0], sizes = [1, 256], strides = [1, 1]} : vector<20x256xf32> to vector<1x256xf32>
    %91 = vector.broadcast %89 : vector<20x1xf32> to vector<20x256xf32>
    %92 = vector.broadcast %90 : vector<1x256xf32> to vector<20x256xf32>
    %93 = arith.mulf %91, %92 : vector<20x256xf32>
    %94 = arith.addf %88, %93 : vector<20x256xf32>
    %c0_19 = arith.constant 0 : index
    %c16 = arith.constant 16 : index
    %95 = vector.load %arg2[%c0_19, %c16] : memref<20x44xf32, #tpu.memory_space<vmem>>, vector<20x1xf32>
    %96 = vector.extract_strided_slice %8 {offsets = [14, 0], sizes = [1, 256], strides = [1, 1]} : vector<20x256xf32> to vector<1x256xf32>
    %97 = vector.broadcast %95 : vector<20x1xf32> to vector<20x256xf32>
    %98 = vector.broadcast %96 : vector<1x256xf32> to vector<20x256xf32>
    %99 = arith.mulf %97, %98 : vector<20x256xf32>
    %100 = arith.addf %94, %99 : vector<20x256xf32>
    %c0_20 = arith.constant 0 : index
    %c17 = arith.constant 17 : index
    %101 = vector.load %arg2[%c0_20, %c17] : memref<20x44xf32, #tpu.memory_space<vmem>>, vector<20x1xf32>
    %102 = vector.extract_strided_slice %8 {offsets = [15, 0], sizes = [1, 256], strides = [1, 1]} : vector<20x256xf32> to vector<1x256xf32>
    %103 = vector.broadcast %101 : vector<20x1xf32> to vector<20x256xf32>
    %104 = vector.broadcast %102 : vector<1x256xf32> to vector<20x256xf32>
    %105 = arith.mulf %103, %104 : vector<20x256xf32>
    %106 = arith.addf %100, %105 : vector<20x256xf32>
    %c0_21 = arith.constant 0 : index
    %c18 = arith.constant 18 : index
    %107 = vector.load %arg2[%c0_21, %c18] : memref<20x44xf32, #tpu.memory_space<vmem>>, vector<20x1xf32>
    %108 = vector.extract_strided_slice %8 {offsets = [16, 0], sizes = [1, 256], strides = [1, 1]} : vector<20x256xf32> to vector<1x256xf32>
    %109 = vector.broadcast %107 : vector<20x1xf32> to vector<20x256xf32>
    %110 = vector.broadcast %108 : vector<1x256xf32> to vector<20x256xf32>
    %111 = arith.mulf %109, %110 : vector<20x256xf32>
    %112 = arith.addf %106, %111 : vector<20x256xf32>
    %c0_22 = arith.constant 0 : index
    %c19 = arith.constant 19 : index
    %113 = vector.load %arg2[%c0_22, %c19] : memref<20x44xf32, #tpu.memory_space<vmem>>, vector<20x1xf32>
    %114 = vector.extract_strided_slice %8 {offsets = [17, 0], sizes = [1, 256], strides = [1, 1]} : vector<20x256xf32> to vector<1x256xf32>
    %115 = vector.broadcast %113 : vector<20x1xf32> to vector<20x256xf32>
    %116 = vector.broadcast %114 : vector<1x256xf32> to vector<20x256xf32>
    %117 = arith.mulf %115, %116 : vector<20x256xf32>
    %118 = arith.addf %112, %117 : vector<20x256xf32>
    %c0_23 = arith.constant 0 : index
    %c20 = arith.constant 20 : index
    %119 = vector.load %arg2[%c0_23, %c20] : memref<20x44xf32, #tpu.memory_space<vmem>>, vector<20x1xf32>
    %120 = vector.extract_strided_slice %8 {offsets = [18, 0], sizes = [1, 256], strides = [1, 1]} : vector<20x256xf32> to vector<1x256xf32>
    %121 = vector.broadcast %119 : vector<20x1xf32> to vector<20x256xf32>
    %122 = vector.broadcast %120 : vector<1x256xf32> to vector<20x256xf32>
    %123 = arith.mulf %121, %122 : vector<20x256xf32>
    %124 = arith.addf %118, %123 : vector<20x256xf32>
    %c0_24 = arith.constant 0 : index
    %c21 = arith.constant 21 : index
    %125 = vector.load %arg2[%c0_24, %c21] : memref<20x44xf32, #tpu.memory_space<vmem>>, vector<20x1xf32>
    %126 = vector.extract_strided_slice %8 {offsets = [19, 0], sizes = [1, 256], strides = [1, 1]} : vector<20x256xf32> to vector<1x256xf32>
    %127 = vector.broadcast %125 : vector<20x1xf32> to vector<20x256xf32>
    %128 = vector.broadcast %126 : vector<1x256xf32> to vector<20x256xf32>
    %129 = arith.mulf %127, %128 : vector<20x256xf32>
    %130 = arith.addf %124, %129 : vector<20x256xf32>
    %131 = math.tanh %130 : vector<20x256xf32>
    %c0_25 = arith.constant 0 : index
    %c23 = arith.constant 23 : index
    %132 = vector.load %arg2[%c0_25, %c23] : memref<20x44xf32, #tpu.memory_space<vmem>>, vector<2x20xf32>
    %c0_26 = arith.constant 0 : index
    %c43 = arith.constant 43 : index
    %133 = vector.load %arg2[%c0_26, %c43] : memref<20x44xf32, #tpu.memory_space<vmem>>, vector<2x1xf32>
    %cst = arith.constant dense<0.000000e+00> : vector<2x256xf32>
    %134 = tpu.matmul %132, %131, %cst {dimension_numbers = #tpu.dot_dimension_numbers<[1], [0], [0], [1], [0, 0, 1, 1], [], []>} : vector<2x20xf32>, vector<20x256xf32>, vector<2x256xf32> -> vector<2x256xf32>
    %135 = vector.broadcast %133 : vector<2x1xf32> to vector<2x256xf32>
    %136 = arith.addf %134, %135 : vector<2x256xf32>
    %c0_27 = arith.constant 0 : index
    %c0_28 = arith.constant 0 : index
    %137 = vector.load %arg3[%c0_27, %c0_28] : memref<2x256xf32, #tpu.memory_space<vmem>>, vector<2x256xf32>
    tpu.vector_store %arg3[%c0_27, %c0_28], %136 {strides = array<i32>} : memref<2x256xf32, #tpu.memory_space<vmem>>, vector<2x256xf32>,
    return
  }
  func.func @transform_0(%arg0: i32) -> (i32, i32) {
    %c0_i32 = arith.constant 0 : i32
    %c0_i32_0 = arith.constant 0 : i32
    return %c0_i32, %arg0 : i32, i32
  }
  func.func @transform_1(%arg0: i32) -> (i32, i32) {
    %c0_i32 = arith.constant 0 : i32
    %c0_i32_0 = arith.constant 0 : i32
    %c0_i32_1 = arith.constant 0 : i32
    return %c0_i32, %c0_i32_0 : i32, i32
  }
  func.func @transform_2(%arg0: i32) -> (i32, i32) {
    %c0_i32 = arith.constant 0 : i32
    %c0_i32_0 = arith.constant 0 : i32
    return %c0_i32, %arg0 : i32, i32
  }
}

</mosaic_0001>

<llo_original>
// kernel: tpu_custom_call.1
$region0: #{tpu_custom_call.1}
  #allocation0 [shape = 'u32[]', space=smem, size = 0x4, offset = 0x4, fixed_abs, tag = 'smem constant byte address 0x4 - core index']
  #allocation1 [shape = 'u32[144,128]{1,0:T(1,128)}', space=vmem, size = 0x12000, scoped, tag = 'internal scratch']
  %s0 = inlined_call_operand.hbm [shape: f32[1,200], index: 0, kind: input, shape index: {}]
  %s1 = inlined_call_operand.hbm [shape: f32[20,44], index: 1, kind: input, shape index: {}]
  %s2 = inlined_call_operand.hbm [shape: f32[2,200], index: 2, kind: output, shape index: {}]
  %s3 = sld [smem:[#allocation0]]
  $region26: #{tpu_custom_call.1} parent=0
    _
  %s5 = ssub.s32 1, %s3
  %s6 = scalar_select 0, %s5, %s3
  $region1: #{tpu_custom_call.1} parent=0
    #allocation2 [shape = 'u8[1024]{0}', space=vmem, size = 0x400, scoped, tag = 'input window, operand 0, single buffered']
    #allocation3 [shape = 's32[1]{0}', space=sflag, size = 0x4, scoped, tag = 'scoped memory for tpu_custom_call.1']
    #allocation4 [shape = 's32[1]{0}', space=sflag, size = 0x4, scoped, tag = 'scoped memory for tpu_custom_call.1']
    #allocation5 [shape = 'u8[12288]{0}', space=vmem, size = 0x3000, scoped, tag = 'input window, operand 1, single buffered']
    #allocation6 [shape = 's32[1]{0}', space=sflag, size = 0x4, scoped, tag = 'scoped memory for tpu_custom_call.1']
    #allocation7 [shape = 'u8[2048]{0}', space=vmem, size = 0x800, scoped, tag = 'output window, operand 0, single buffered']
    %7 = vsyncpa [#allocation3], 0
    %8 = vsyncpa [#allocation6], 0
    %9 = vsyncpa [#allocation4], 0
    // Predicated region
    $region2: #{tpu_custom_call.1} parent=1 // pred_check
      _
    $region3: #{tpu_custom_call.1} parent=1 // pred_check_branch
      %11 = sbr.rel (0) target = $region5
    $region4: #{tpu_custom_call.1} parent=1 // pred_region
      %s13 = ssub.s32 32, 32
      %14 = vsyncadd [#allocation3], %s13
      %s16 = sshll.u32 [#allocation2], 4
      %s17 = int_to_ptr.vmem [resolvable:$true] %s16
      %19 = dma.hbm_to_vmem [thread:$0]  %s0, 32, %s17, [#allocation3]
    $region5: #{tpu_custom_call.1} parent=1 // pred_fallthru
      _
    // Predicated region
    $region6: #{tpu_custom_call.1} parent=1 // pred_check
      _
    $region7: #{tpu_custom_call.1} parent=1 // pred_check_branch
      %21 = sbr.rel (0) target = $region9
    $region8: #{tpu_custom_call.1} parent=1 // pred_region
      %s23 = ssub.s32 384, 384
      %24 = vsyncadd [#allocation6], %s23
      %s25 = sshll.u32 [#allocation5], 4
      %s26 = int_to_ptr.vmem [resolvable:$true] %s25
      %31 = dma.hbm_to_vmem [thread:$0]  %s1, 384, %s26, [#allocation6], 128, 128, 8
    $region9: #{tpu_custom_call.1} parent=1 // pred_fallthru
      _
    // Predicated region
    $region10: #{tpu_custom_call.1} parent=1 // pred_check
      _
    $region11: #{tpu_custom_call.1} parent=1 // pred_check_branch
      %33 = sbr.rel (0) target = $region13
    $region12: #{tpu_custom_call.1} parent=1 // pred_region
      %34 = dma.done [#allocation3], 32
    $region13: #{tpu_custom_call.1} parent=1 // pred_fallthru
      _
    // Predicated region
    $region14: #{tpu_custom_call.1} parent=1 // pred_check
      _
    $region15: #{tpu_custom_call.1} parent=1 // pred_check_branch
      %36 = sbr.rel (0) target = $region17
    $region16: #{tpu_custom_call.1} parent=1 // pred_region
      %37 = dma.done [#allocation6], 384
    $region17: #{tpu_custom_call.1} parent=1 // pred_fallthru
      _
    %v38 = vld [vmem:[#allocation2] sm:$0x3]
    %v39 = vld [vmem:[#allocation5] sm:$0xff]
    %v40 = vld [vmem:[#allocation5 + $0x8] sm:$0xff]
    %v41 = vld [vmem:[#allocation5 + $0x10] sm:$0xf]
    %43 = vset.pattern.permute.xlu0 0
    %44 = vperm.xlu0 %43, %v39
    %v45 = vpop.permute.xlu0 %44
    %48 = vset.pattern.permute.xlu0 0
    %49 = vperm.xlu0 %48, %v40
    %v50 = vpop.permute.xlu0 %49
    %53 = vset.pattern.permute.xlu0 0
    %54 = vperm.xlu0 %53, %v41
    %v55 = vpop.permute.xlu0 %54
    %v58 = vlaneseq
    %v59 = vshrl.u32 %v58, 7
    %v60 = vsub.s32 0, %v59
    %v61 = vrot.slane %v38, %v60
    %v62 = vlaneseq
    %v63 = vshrl.u32 %v62, 7
    %v64 = vsub.s32 1, %v63
    %v65 = vrot.slane %v38, %v64
    %v68 = vmul.f32 %v45, %v61
    %v69 = vmul.f32 %v45, %v65
    %v70 = vmul.f32 %v50, %v61
    %v71 = vmul.f32 %v50, %v65
    %v72 = vmul.f32 %v55, %v61
    %v73 = vmul.f32 %v55, %v65
    %74 = vset.pattern.permute.xlu0 1
    %75 = vperm.xlu0 %74, %v39
    %v76 = vpop.permute.xlu0 %75
    %78 = vset.pattern.permute.xlu0 1
    %79 = vperm.xlu0 %78, %v40
    %v80 = vpop.permute.xlu0 %79
    %82 = vset.pattern.permute.xlu0 1
    %83 = vperm.xlu0 %82, %v41
    %v84 = vpop.permute.xlu0 %83
    %v86 = vadd.f32 %v68, %v76
    %v87 = vadd.f32 %v69, %v76
    %v88 = vadd.f32 %v70, %v80
    %v89 = vadd.f32 %v71, %v80
    %v90 = vadd.f32 %v72, %v84
    %v91 = vadd.f32 %v73, %v84
    %v92 = vtanh.pop %v86
    %v93 = vtanh.pop %v87
    %v94 = vtanh.pop %v88
    %v95 = vtanh.pop %v89
    %v96 = vtanh.pop %v90
    %v97 = vtanh.pop %v91
    %98 = vset.pattern.permute.xlu0 2
    %99 = vperm.xlu0 %98, %v39
    %v100 = vpop.permute.xlu0 %99
    %102 = vset.pattern.permute.xlu0 2
    %103 = vperm.xlu0 %102, %v40
    %v104 = vpop.permute.xlu0 %103
    %106 = vset.pattern.permute.xlu0 2
    %107 = vperm.xlu0 %106, %v41
    %v108 = vpop.permute.xlu0 %107
    %v110 = vlaneseq
    %v111 = vshrl.u32 %v110, 7
    %v112 = vsub.s32 0, %v111
    %v113 = vrot.slane %v92, %v112
    %v114 = vlaneseq
    %v115 = vshrl.u32 %v114, 7
    %v116 = vsub.s32 0, %v115
    %v117 = vrot.slane %v93, %v116
    %v118 = vmul.f32 %v100, %v113
    %v119 = vmul.f32 %v100, %v117
    %v120 = vmul.f32 %v104, %v113
    %v121 = vmul.f32 %v104, %v117
    %v122 = vmul.f32 %v108, %v113
    %v123 = vmul.f32 %v108, %v117
    %124 = vset.pattern.permute.xlu0 22
    %125 = vperm.xlu0 %124, %v39
    %v126 = vpop.permute.xlu0 %125
    %128 = vset.pattern.permute.xlu0 22
    %129 = vperm.xlu0 %128, %v40
    %v130 = vpop.permute.xlu0 %129
    %132 = vset.pattern.permute.xlu0 22
    %133 = vperm.xlu0 %132, %v41
    %v134 = vpop.permute.xlu0 %133
    %v136 = vadd.f32 %v118, %v126
    %v137 = vadd.f32 %v119, %v126
    %v138 = vadd.f32 %v120, %v130
    %v139 = vadd.f32 %v121, %v130
    %v140 = vadd.f32 %v122, %v134
    %v141 = vadd.f32 %v123, %v134
    %142 = vset.pattern.permute.xlu0 3
    %143 = vperm.xlu0 %142, %v39
    %v144 = vpop.permute.xlu0 %143
    %146 = vset.pattern.permute.xlu0 3
    %147 = vperm.xlu0 %146, %v40
    %v148 = vpop.permute.xlu0 %147
    %150 = vset.pattern.permute.xlu0 3
    %151 = vperm.xlu0 %150, %v41
    %v152 = vpop.permute.xlu0 %151
    %v154 = vlaneseq
    %v155 = vshrl.u32 %v154, 7
    %v156 = vsub.s32 1, %v155
    %v157 = vrot.slane %v92, %v156
    %v158 = vlaneseq
    %v159 = vshrl.u32 %v158, 7
    %v160 = vsub.s32 1, %v159
    %v161 = vrot.slane %v93, %v160
    %v162 = vmul.f32 %v144, %v157
    %v163 = vmul.f32 %v144, %v161
    %v164 = vmul.f32 %v148, %v157
    %v165 = vmul.f32 %v148, %v161
    %v166 = vmul.f32 %v152, %v157
    %v167 = vmul.f32 %v152, %v161
    %v168 = vadd.f32 %v136, %v162
    %v169 = vadd.f32 %v137, %v163
    %v170 = vadd.f32 %v138, %v164
    %v171 = vadd.f32 %v139, %v165
    %v172 = vadd.f32 %v140, %v166
    %v173 = vadd.f32 %v141, %v167
    %174 = vset.pattern.permute.xlu0 4
    %175 = vperm.xlu0 %174, %v39
    %v176 = vpop.permute.xlu0 %175
    %178 = vset.pattern.permute.xlu0 4
    %179 = vperm.xlu0 %178, %v40
    %v180 = vpop.permute.xlu0 %179
    %182 = vset.pattern.permute.xlu0 4
    %183 = vperm.xlu0 %182, %v41
    %v184 = vpop.permute.xlu0 %183
    %v186 = vlaneseq
    %v187 = vshrl.u32 %v186, 7
    %v188 = vsub.s32 2, %v187
    %v189 = vrot.slane %v92, %v188
    %v190 = vlaneseq
    %v191 = vshrl.u32 %v190, 7
    %v192 = vsub.s32 2, %v191
    %v193 = vrot.slane %v93, %v192
    %v194 = vmul.f32 %v176, %v189
    %v195 = vmul.f32 %v176, %v193
    %v196 = vmul.f32 %v180, %v189
    %v197 = vmul.f32 %v180, %v193
    %v198 = vmul.f32 %v184, %v189
    %v199 = vmul.f32 %v184, %v193
    %v200 = vadd.f32 %v168, %v194
    %v201 = vadd.f32 %v169, %v195
    %v202 = vadd.f32 %v170, %v196
    %v203 = vadd.f32 %v171, %v197
    %v204 = vadd.f32 %v172, %v198
    %v205 = vadd.f32 %v173, %v199
    %206 = vset.pattern.permute.xlu0 5
    %207 = vperm.xlu0 %206, %v39
    %v208 = vpop.permute.xlu0 %207
    %210 = vset.pattern.permute.xlu0 5
    %211 = vperm.xlu0 %210, %v40
    %v212 = vpop.permute.xlu0 %211
    %214 = vset.pattern.permute.xlu0 5
    %215 = vperm.xlu0 %214, %v41
    %v216 = vpop.permute.xlu0 %215
    %v218 = vlaneseq
    %v219 = vshrl.u32 %v218, 7
    %v220 = vsub.s32 3, %v219
    %v221 = vrot.slane %v92, %v220
    %v222 = vlaneseq
    %v223 = vshrl.u32 %v222, 7
    %v224 = vsub.s32 3, %v223
    %v225 = vrot.slane %v93, %v224
    %v226 = vmul.f32 %v208, %v221
    %v227 = vmul.f32 %v208, %v225
    %v228 = vmul.f32 %v212, %v221
    %v229 = vmul.f32 %v212, %v225
    %v230 = vmul.f32 %v216, %v221
    %v231 = vmul.f32 %v216, %v225
    %v232 = vadd.f32 %v200, %v226
    %v233 = vadd.f32 %v201, %v227
    %v234 = vadd.f32 %v202, %v228
    %v235 = vadd.f32 %v203, %v229
    %v236 = vadd.f32 %v204, %v230
    %v237 = vadd.f32 %v205, %v231
    %238 = vset.pattern.permute.xlu0 6
    %239 = vperm.xlu0 %238, %v39
    %v240 = vpop.permute.xlu0 %239
    %242 = vset.pattern.permute.xlu0 6
    %243 = vperm.xlu0 %242, %v40
    %v244 = vpop.permute.xlu0 %243
    %246 = vset.pattern.permute.xlu0 6
    %247 = vperm.xlu0 %246, %v41
    %v248 = vpop.permute.xlu0 %247
    %v250 = vlaneseq
    %v251 = vshrl.u32 %v250, 7
    %v252 = vsub.s32 4, %v251
    %v253 = vrot.slane %v92, %v252
    %v254 = vlaneseq
    %v255 = vshrl.u32 %v254, 7
    %v256 = vsub.s32 4, %v255
    %v257 = vrot.slane %v93, %v256
    %v258 = vmul.f32 %v240, %v253
    %v259 = vmul.f32 %v240, %v257
    %v260 = vmul.f32 %v244, %v253
    %v261 = vmul.f32 %v244, %v257
    %v262 = vmul.f32 %v248, %v253
    %v263 = vmul.f32 %v248, %v257
    %v264 = vadd.f32 %v232, %v258
    %v265 = vadd.f32 %v233, %v259
    %v266 = vadd.f32 %v234, %v260
    %v267 = vadd.f32 %v235, %v261
    %v268 = vadd.f32 %v236, %v262
    %v269 = vadd.f32 %v237, %v263
    %270 = vset.pattern.permute.xlu0 7
    %271 = vperm.xlu0 %270, %v39
    %v272 = vpop.permute.xlu0 %271
    %274 = vset.pattern.permute.xlu0 7
    %275 = vperm.xlu0 %274, %v40
    %v276 = vpop.permute.xlu0 %275
    %278 = vset.pattern.permute.xlu0 7
    %279 = vperm.xlu0 %278, %v41
    %v280 = vpop.permute.xlu0 %279
    %v282 = vlaneseq
    %v283 = vshrl.u32 %v282, 7
    %v284 = vsub.s32 5, %v283
    %v285 = vrot.slane %v92, %v284
    %v286 = vlaneseq
    %v287 = vshrl.u32 %v286, 7
    %v288 = vsub.s32 5, %v287
    %v289 = vrot.slane %v93, %v288
    %v290 = vmul.f32 %v272, %v285
    %v291 = vmul.f32 %v272, %v289
    %v292 = vmul.f32 %v276, %v285
    %v293 = vmul.f32 %v276, %v289
    %v294 = vmul.f32 %v280, %v285
    %v295 = vmul.f32 %v280, %v289
    %v296 = vadd.f32 %v264, %v290
    %v297 = vadd.f32 %v265, %v291
    %v298 = vadd.f32 %v266, %v292
    %v299 = vadd.f32 %v267, %v293
    %v300 = vadd.f32 %v268, %v294
    %v301 = vadd.f32 %v269, %v295
    %302 = vset.pattern.permute.xlu0 8
    %303 = vperm.xlu0 %302, %v39
    %v304 = vpop.permute.xlu0 %303
    %306 = vset.pattern.permute.xlu0 8
    %307 = vperm.xlu0 %306, %v40
    %v308 = vpop.permute.xlu0 %307
    %310 = vset.pattern.permute.xlu0 8
    %311 = vperm.xlu0 %310, %v41
    %v312 = vpop.permute.xlu0 %311
    %v314 = vlaneseq
    %v315 = vshrl.u32 %v314, 7
    %v316 = vsub.s32 6, %v315
    %v317 = vrot.slane %v92, %v316
    %v318 = vlaneseq
    %v319 = vshrl.u32 %v318, 7
    %v320 = vsub.s32 6, %v319
    %v321 = vrot.slane %v93, %v320
    %v322 = vmul.f32 %v304, %v317
    %v323 = vmul.f32 %v304, %v321
    %v324 = vmul.f32 %v308, %v317
    %v325 = vmul.f32 %v308, %v321
    %v326 = vmul.f32 %v312, %v317
    %v327 = vmul.f32 %v312, %v321
    %v328 = vadd.f32 %v296, %v322
    %v329 = vadd.f32 %v297, %v323
    %v330 = vadd.f32 %v298, %v324
    %v331 = vadd.f32 %v299, %v325
    %v332 = vadd.f32 %v300, %v326
    %v333 = vadd.f32 %v301, %v327
    %334 = vset.pattern.permute.xlu0 9
    %335 = vperm.xlu0 %334, %v39
    %v336 = vpop.permute.xlu0 %335
    %338 = vset.pattern.permute.xlu0 9
    %339 = vperm.xlu0 %338, %v40
    %v340 = vpop.permute.xlu0 %339
    %342 = vset.pattern.permute.xlu0 9
    %343 = vperm.xlu0 %342, %v41
    %v344 = vpop.permute.xlu0 %343
    %v346 = vlaneseq
    %v347 = vshrl.u32 %v346, 7
    %v348 = vsub.s32 7, %v347
    %v349 = vrot.slane %v92, %v348
    %v350 = vlaneseq
    %v351 = vshrl.u32 %v350, 7
    %v352 = vsub.s32 7, %v351
    %v353 = vrot.slane %v93, %v352
    %v354 = vmul.f32 %v336, %v349
    %v355 = vmul.f32 %v336, %v353
    %v356 = vmul.f32 %v340, %v349
    %v357 = vmul.f32 %v340, %v353
    %v358 = vmul.f32 %v344, %v349
    %v359 = vmul.f32 %v344, %v353
    %v360 = vadd.f32 %v328, %v354
    %v361 = vadd.f32 %v329, %v355
    %v362 = vadd.f32 %v330, %v356
    %v363 = vadd.f32 %v331, %v357
    %v364 = vadd.f32 %v332, %v358
    %v365 = vadd.f32 %v333, %v359
    %366 = vset.pattern.permute.xlu0 10
    %367 = vperm.xlu0 %366, %v39
    %v368 = vpop.permute.xlu0 %367
    %370 = vset.pattern.permute.xlu0 10
    %371 = vperm.xlu0 %370, %v40
    %v372 = vpop.permute.xlu0 %371
    %374 = vset.pattern.permute.xlu0 10
    %375 = vperm.xlu0 %374, %v41
    %v376 = vpop.permute.xlu0 %375
    %v378 = vlaneseq
    %v379 = vshrl.u32 %v378, 7
    %v380 = vsub.s32 0, %v379
    %v381 = vrot.slane %v94, %v380
    %v382 = vlaneseq
    %v383 = vshrl.u32 %v382, 7
    %v384 = vsub.s32 0, %v383
    %v385 = vrot.slane %v95, %v384
    %v386 = vmul.f32 %v368, %v381
    %v387 = vmul.f32 %v368, %v385
    %v388 = vmul.f32 %v372, %v381
    %v389 = vmul.f32 %v372, %v385
    %v390 = vmul.f32 %v376, %v381
    %v391 = vmul.f32 %v376, %v385
    %v392 = vadd.f32 %v360, %v386
    %v393 = vadd.f32 %v361, %v387
    %v394 = vadd.f32 %v362, %v388
    %v395 = vadd.f32 %v363, %v389
    %v396 = vadd.f32 %v364, %v390
    %v397 = vadd.f32 %v365, %v391
    %398 = vset.pattern.permute.xlu0 11
    %399 = vperm.xlu0 %398, %v39
    %v400 = vpop.permute.xlu0 %399
    %402 = vset.pattern.permute.xlu0 11
    %403 = vperm.xlu0 %402, %v40
    %v404 = vpop.permute.xlu0 %403
    %406 = vset.pattern.permute.xlu0 11
    %407 = vperm.xlu0 %406, %v41
    %v408 = vpop.permute.xlu0 %407
    %v410 = vlaneseq
    %v411 = vshrl.u32 %v410, 7
    %v412 = vsub.s32 1, %v411
    %v413 = vrot.slane %v94, %v412
    %v414 = vlaneseq
    %v415 = vshrl.u32 %v414, 7
    %v416 = vsub.s32 1, %v415
    %v417 = vrot.slane %v95, %v416
    %v418 = vmul.f32 %v400, %v413
    %v419 = vmul.f32 %v400, %v417
    %v420 = vmul.f32 %v404, %v413
    %v421 = vmul.f32 %v404, %v417
    %v422 = vmul.f32 %v408, %v413
    %v423 = vmul.f32 %v408, %v417
    %v424 = vadd.f32 %v392, %v418
    %v425 = vadd.f32 %v393, %v419
    %v426 = vadd.f32 %v394, %v420
    %v427 = vadd.f32 %v395, %v421
    %v428 = vadd.f32 %v396, %v422
    %v429 = vadd.f32 %v397, %v423
    %430 = vset.pattern.permute.xlu0 12
    %431 = vperm.xlu0 %430, %v39
    %v432 = vpop.permute.xlu0 %431
    %434 = vset.pattern.permute.xlu0 12
    %435 = vperm.xlu0 %434, %v40
    %v436 = vpop.permute.xlu0 %435
    %438 = vset.pattern.permute.xlu0 12
    %439 = vperm.xlu0 %438, %v41
    %v440 = vpop.permute.xlu0 %439
    %v442 = vlaneseq
    %v443 = vshrl.u32 %v442, 7
    %v444 = vsub.s32 2, %v443
    %v445 = vrot.slane %v94, %v444
    %v446 = vlaneseq
    %v447 = vshrl.u32 %v446, 7
    %v448 = vsub.s32 2, %v447
    %v449 = vrot.slane %v95, %v448
    %v450 = vmul.f32 %v432, %v445
    %v451 = vmul.f32 %v432, %v449
    %v452 = vmul.f32 %v436, %v445
    %v453 = vmul.f32 %v436, %v449
    %v454 = vmul.f32 %v440, %v445
    %v455 = vmul.f32 %v440, %v449
    %v456 = vadd.f32 %v424, %v450
    %v457 = vadd.f32 %v425, %v451
    %v458 = vadd.f32 %v426, %v452
    %v459 = vadd.f32 %v427, %v453
    %v460 = vadd.f32 %v428, %v454
    %v461 = vadd.f32 %v429, %v455
    %462 = vset.pattern.permute.xlu0 13
    %463 = vperm.xlu0 %462, %v39
    %v464 = vpop.permute.xlu0 %463
    %466 = vset.pattern.permute.xlu0 13
    %467 = vperm.xlu0 %466, %v40
    %v468 = vpop.permute.xlu0 %467
    %470 = vset.pattern.permute.xlu0 13
    %471 = vperm.xlu0 %470, %v41
    %v472 = vpop.permute.xlu0 %471
    %v474 = vlaneseq
    %v475 = vshrl.u32 %v474, 7
    %v476 = vsub.s32 3, %v475
    %v477 = vrot.slane %v94, %v476
    %v478 = vlaneseq
    %v479 = vshrl.u32 %v478, 7
    %v480 = vsub.s32 3, %v479
    %v481 = vrot.slane %v95, %v480
    %v482 = vmul.f32 %v464, %v477
    %v483 = vmul.f32 %v464, %v481
    %v484 = vmul.f32 %v468, %v477
    %v485 = vmul.f32 %v468, %v481
    %v486 = vmul.f32 %v472, %v477
    %v487 = vmul.f32 %v472, %v481
    %v488 = vadd.f32 %v456, %v482
    %v489 = vadd.f32 %v457, %v483
    %v490 = vadd.f32 %v458, %v484
    %v491 = vadd.f32 %v459, %v485
    %v492 = vadd.f32 %v460, %v486
    %v493 = vadd.f32 %v461, %v487
    %494 = vset.pattern.permute.xlu0 14
    %495 = vperm.xlu0 %494, %v39
    %v496 = vpop.permute.xlu0 %495
    %498 = vset.pattern.permute.xlu0 14
    %499 = vperm.xlu0 %498, %v40
    %v500 = vpop.permute.xlu0 %499
    %502 = vset.pattern.permute.xlu0 14
    %503 = vperm.xlu0 %502, %v41
    %v504 = vpop.permute.xlu0 %503
    %v506 = vlaneseq
    %v507 = vshrl.u32 %v506, 7
    %v508 = vsub.s32 4, %v507
    %v509 = vrot.slane %v94, %v508
    %v510 = vlaneseq
    %v511 = vshrl.u32 %v510, 7
    %v512 = vsub.s32 4, %v511
    %v513 = vrot.slane %v95, %v512
    %v514 = vmul.f32 %v496, %v509
    %v515 = vmul.f32 %v496, %v513
    %v516 = vmul.f32 %v500, %v509
    %v517 = vmul.f32 %v500, %v513
    %v518 = vmul.f32 %v504, %v509
    %v519 = vmul.f32 %v504, %v513
    %v520 = vadd.f32 %v488, %v514
    %v521 = vadd.f32 %v489, %v515
    %v522 = vadd.f32 %v490, %v516
    %v523 = vadd.f32 %v491, %v517
    %v524 = vadd.f32 %v492, %v518
    %v525 = vadd.f32 %v493, %v519
    %526 = vset.pattern.permute.xlu0 15
    %527 = vperm.xlu0 %526, %v39
    %v528 = vpop.permute.xlu0 %527
    %530 = vset.pattern.permute.xlu0 15
    %531 = vperm.xlu0 %530, %v40
    %v532 = vpop.permute.xlu0 %531
    %534 = vset.pattern.permute.xlu0 15
    %535 = vperm.xlu0 %534, %v41
    %v536 = vpop.permute.xlu0 %535
    %v538 = vlaneseq
    %v539 = vshrl.u32 %v538, 7
    %v540 = vsub.s32 5, %v539
    %v541 = vrot.slane %v94, %v540
    %v542 = vlaneseq
    %v543 = vshrl.u32 %v542, 7
    %v544 = vsub.s32 5, %v543
    %v545 = vrot.slane %v95, %v544
    %v546 = vmul.f32 %v528, %v541
    %v547 = vmul.f32 %v528, %v545
    %v548 = vmul.f32 %v532, %v541
    %v549 = vmul.f32 %v532, %v545
    %v550 = vmul.f32 %v536, %v541
    %v551 = vmul.f32 %v536, %v545
    %v552 = vadd.f32 %v520, %v546
    %v553 = vadd.f32 %v521, %v547
    %v554 = vadd.f32 %v522, %v548
    %v555 = vadd.f32 %v523, %v549
    %v556 = vadd.f32 %v524, %v550
    %v557 = vadd.f32 %v525, %v551
    %558 = vset.pattern.permute.xlu0 16
    %559 = vperm.xlu0 %558, %v39
    %v560 = vpop.permute.xlu0 %559
    %562 = vset.pattern.permute.xlu0 16
    %563 = vperm.xlu0 %562, %v40
    %v564 = vpop.permute.xlu0 %563
    %566 = vset.pattern.permute.xlu0 16
    %567 = vperm.xlu0 %566, %v41
    %v568 = vpop.permute.xlu0 %567
    %v570 = vlaneseq
    %v571 = vshrl.u32 %v570, 7
    %v572 = vsub.s32 6, %v571
    %v573 = vrot.slane %v94, %v572
    %v574 = vlaneseq
    %v575 = vshrl.u32 %v574, 7
    %v576 = vsub.s32 6, %v575
    %v577 = vrot.slane %v95, %v576
    %v578 = vmul.f32 %v560, %v573
    %v579 = vmul.f32 %v560, %v577
    %v580 = vmul.f32 %v564, %v573
    %v581 = vmul.f32 %v564, %v577
    %v582 = vmul.f32 %v568, %v573
    %v583 = vmul.f32 %v568, %v577
    %v584 = vadd.f32 %v552, %v578
    %v585 = vadd.f32 %v553, %v579
    %v586 = vadd.f32 %v554, %v580
    %v587 = vadd.f32 %v555, %v581
    %v588 = vadd.f32 %v556, %v582
    %v589 = vadd.f32 %v557, %v583
    %590 = vset.pattern.permute.xlu0 17
    %591 = vperm.xlu0 %590, %v39
    %v592 = vpop.permute.xlu0 %591
    %594 = vset.pattern.permute.xlu0 17
    %595 = vperm.xlu0 %594, %v40
    %v596 = vpop.permute.xlu0 %595
    %598 = vset.pattern.permute.xlu0 17
    %599 = vperm.xlu0 %598, %v41
    %v600 = vpop.permute.xlu0 %599
    %v602 = vlaneseq
    %v603 = vshrl.u32 %v602, 7
    %v604 = vsub.s32 7, %v603
    %v605 = vrot.slane %v94, %v604
    %v606 = vlaneseq
    %v607 = vshrl.u32 %v606, 7
    %v608 = vsub.s32 7, %v607
    %v609 = vrot.slane %v95, %v608
    %v610 = vmul.f32 %v592, %v605
    %v611 = vmul.f32 %v592, %v609
    %v612 = vmul.f32 %v596, %v605
    %v613 = vmul.f32 %v596, %v609
    %v614 = vmul.f32 %v600, %v605
    %v615 = vmul.f32 %v600, %v609
    %v616 = vadd.f32 %v584, %v610
    %v617 = vadd.f32 %v585, %v611
    %v618 = vadd.f32 %v586, %v612
    %v619 = vadd.f32 %v587, %v613
    %v620 = vadd.f32 %v588, %v614
    %v621 = vadd.f32 %v589, %v615
    %622 = vset.pattern.permute.xlu0 18
    %623 = vperm.xlu0 %622, %v39
    %v624 = vpop.permute.xlu0 %623
    %626 = vset.pattern.permute.xlu0 18
    %627 = vperm.xlu0 %626, %v40
    %v628 = vpop.permute.xlu0 %627
    %630 = vset.pattern.permute.xlu0 18
    %631 = vperm.xlu0 %630, %v41
    %v632 = vpop.permute.xlu0 %631
    %v634 = vlaneseq
    %v635 = vshrl.u32 %v634, 7
    %v636 = vsub.s32 0, %v635
    %v637 = vrot.slane %v96, %v636
    %v638 = vlaneseq
    %v639 = vshrl.u32 %v638, 7
    %v640 = vsub.s32 0, %v639
    %v641 = vrot.slane %v97, %v640
    %v642 = vmul.f32 %v624, %v637
    %v643 = vmul.f32 %v624, %v641
    %v644 = vmul.f32 %v628, %v637
    %v645 = vmul.f32 %v628, %v641
    %v646 = vmul.f32 %v632, %v637
    %v647 = vmul.f32 %v632, %v641
    %v648 = vadd.f32 %v616, %v642
    %v649 = vadd.f32 %v617, %v643
    %v650 = vadd.f32 %v618, %v644
    %v651 = vadd.f32 %v619, %v645
    %v652 = vadd.f32 %v620, %v646
    %v653 = vadd.f32 %v621, %v647
    %654 = vset.pattern.permute.xlu0 19
    %655 = vperm.xlu0 %654, %v39
    %v656 = vpop.permute.xlu0 %655
    %658 = vset.pattern.permute.xlu0 19
    %659 = vperm.xlu0 %658, %v40
    %v660 = vpop.permute.xlu0 %659
    %662 = vset.pattern.permute.xlu0 19
    %663 = vperm.xlu0 %662, %v41
    %v664 = vpop.permute.xlu0 %663
    %v666 = vlaneseq
    %v667 = vshrl.u32 %v666, 7
    %v668 = vsub.s32 1, %v667
    %v669 = vrot.slane %v96, %v668
    %v670 = vlaneseq
    %v671 = vshrl.u32 %v670, 7
    %v672 = vsub.s32 1, %v671
    %v673 = vrot.slane %v97, %v672
    %v674 = vmul.f32 %v656, %v669
    %v675 = vmul.f32 %v656, %v673
    %v676 = vmul.f32 %v660, %v669
    %v677 = vmul.f32 %v660, %v673
    %v678 = vmul.f32 %v664, %v669
    %v679 = vmul.f32 %v664, %v673
    %v680 = vadd.f32 %v648, %v674
    %v681 = vadd.f32 %v649, %v675
    %v682 = vadd.f32 %v650, %v676
    %v683 = vadd.f32 %v651, %v677
    %v684 = vadd.f32 %v652, %v678
    %v685 = vadd.f32 %v653, %v679
    %686 = vset.pattern.permute.xlu0 20
    %687 = vperm.xlu0 %686, %v39
    %v688 = vpop.permute.xlu0 %687
    %690 = vset.pattern.permute.xlu0 20
    %691 = vperm.xlu0 %690, %v40
    %v692 = vpop.permute.xlu0 %691
    %694 = vset.pattern.permute.xlu0 20
    %695 = vperm.xlu0 %694, %v41
    %v696 = vpop.permute.xlu0 %695
    %v698 = vlaneseq
    %v699 = vshrl.u32 %v698, 7
    %v700 = vsub.s32 2, %v699
    %v701 = vrot.slane %v96, %v700
    %v702 = vlaneseq
    %v703 = vshrl.u32 %v702, 7
    %v704 = vsub.s32 2, %v703
    %v705 = vrot.slane %v97, %v704
    %v706 = vmul.f32 %v688, %v701
    %v707 = vmul.f32 %v688, %v705
    %v708 = vmul.f32 %v692, %v701
    %v709 = vmul.f32 %v692, %v705
    %v710 = vmul.f32 %v696, %v701
    %v711 = vmul.f32 %v696, %v705
    %v712 = vadd.f32 %v680, %v706
    %v713 = vadd.f32 %v681, %v707
    %v714 = vadd.f32 %v682, %v708
    %v715 = vadd.f32 %v683, %v709
    %v716 = vadd.f32 %v684, %v710
    %v717 = vadd.f32 %v685, %v711
    %718 = vset.pattern.permute.xlu0 21
    %719 = vperm.xlu0 %718, %v39
    %v720 = vpop.permute.xlu0 %719
    %722 = vset.pattern.permute.xlu0 21
    %723 = vperm.xlu0 %722, %v40
    %v724 = vpop.permute.xlu0 %723
    %726 = vset.pattern.permute.xlu0 21
    %727 = vperm.xlu0 %726, %v41
    %v728 = vpop.permute.xlu0 %727
    %v730 = vlaneseq
    %v731 = vshrl.u32 %v730, 7
    %v732 = vsub.s32 3, %v731
    %v733 = vrot.slane %v96, %v732
    %v734 = vlaneseq
    %v735 = vshrl.u32 %v734, 7
    %v736 = vsub.s32 3, %v735
    %v737 = vrot.slane %v97, %v736
    %v738 = vmul.f32 %v720, %v733
    %v739 = vmul.f32 %v720, %v737
    %v740 = vmul.f32 %v724, %v733
    %v741 = vmul.f32 %v724, %v737
    %v742 = vmul.f32 %v728, %v733
    %v743 = vmul.f32 %v728, %v737
    %v744 = vadd.f32 %v712, %v738
    %v745 = vadd.f32 %v713, %v739
    %v746 = vadd.f32 %v714, %v740
    %v747 = vadd.f32 %v715, %v741
    %v748 = vadd.f32 %v716, %v742
    %v749 = vadd.f32 %v717, %v743
    %v750 = vtanh.pop %v744
    %v751 = vtanh.pop %v745
    %v752 = vtanh.pop %v746
    %v753 = vtanh.pop %v747
    %v754 = vtanh.pop %v748
    %v755 = vtanh.pop %v749
    %v756 = vld [vmem:[#allocation5] sm:$0x3]
    %758 = vset.pattern.permute.xlu0 43
    %759 = vperm.xlu0 %758, %v756
    %v760 = vpop.permute.xlu0 %759
    %762 = vrot.lane.b32.xlu0 %v756, 105
    %v763 = vpop.permute.xlu0 %762
    %vm764 = vcmask 162816
    %v765 = vsel %vm764, %v763, 0
    %vm767 = vcmask 1043456
    %v769 = vsel %vm767, %v754, 0
    %v772 = vsel %vm767, %v755, 0
    %774 = vmatprep.subr.mxu0 0.0
    %775 = vmatpush1.msra.mxu0 0.0
    %776 = vmatprep.subr.mxu0 0.0
    %777 = vmatpush1.msra.mxu0 0.0
    %778 = vmatprep.subr.mxu0 0.0
    %779 = vmatpush1.msra.mxu0 0.0
    %780 = vmatprep.subr.mxu0 0.0
    %781 = vmatpush1.msra.mxu0 0.0
    %782 = vmatprep.subr.mxu0 0.0
    %783 = vmatpush1.msra.mxu0 0.0
    %784 = vmatprep.subr.mxu0 0.0
    %785 = vmatpush1.msra.mxu0 0.0
    %786 = vmatprep.subr.mxu0 0.0
    %787 = vmatpush1.msra.mxu0 0.0
    %788 = vmatprep.subr.mxu0 0.0
    %789 = vmatpush1.msra.mxu0 0.0
    %790 = vmatprep.subr.mxu0 0.0
    %791 = vmatpush1.msra.mxu0 0.0
    %792 = vmatprep.subr.mxu0 0.0
    %793 = vmatpush1.msra.mxu0 0.0
    %794 = vmatprep.subr.mxu0 0.0
    %795 = vmatpush1.msra.mxu0 0.0
    %796 = vmatprep.subr.mxu0 0.0
    %797 = vmatpush1.msra.mxu0 0.0
    %798 = vmatprep.subr.mxu0 0.0
    %799 = vmatpush1.msra.mxu0 0.0
    %800 = vmatprep.subr.mxu0 %v772
    %801 = vmatpush1.msra.mxu0 %v769
    %802 = vmatprep.subr.mxu0 %v753
    %803 = vmatpush1.msra.mxu0 %v752
    %804 = vmatprep.subr.mxu0 %v751
    %805 = vmatpush1.msra.mxu0 %v750
    %806 = vmatprep.subr.mxu0 0.0
    %807 = vmatpush2.msra.mxu0 0.0
    %808 = vmatprep.subr.mxu0 0.0
    %809 = vmatpush2.msra.mxu0 0.0
    %810 = vmatprep.subr.mxu0 0.0
    %811 = vmatpush2.msra.mxu0 0.0
    %812 = vmatprep.subr.mxu0 0.0
    %813 = vmatpush2.msra.mxu0 0.0
    %814 = vmatprep.subr.mxu0 0.0
    %815 = vmatpush2.msra.mxu0 0.0
    %816 = vmatprep.subr.mxu0 0.0
    %817 = vmatpush2.msra.mxu0 0.0
    %818 = vmatprep.subr.mxu0 0.0
    %819 = vmatpush2.msra.mxu0 0.0
    %820 = vmatprep.subr.mxu0 0.0
    %821 = vmatpush2.msra.mxu0 0.0
    %822 = vmatprep.subr.mxu0 0.0
    %823 = vmatpush2.msra.mxu0 0.0
    %824 = vmatprep.subr.mxu0 0.0
    %825 = vmatpush2.msra.mxu0 0.0
    %826 = vmatprep.subr.mxu0 0.0
    %827 = vmatpush2.msra.mxu0 0.0
    %828 = vmatprep.subr.mxu0 0.0
    %829 = vmatpush2.msra.mxu0 0.0
    %830 = vmatprep.subr.mxu0 0.0
    %831 = vmatpush2.msra.mxu0 0.0
    %832 = vmatprep.subr.mxu0 0.0
    %833 = vmatpush2.msra.mxu0 0.0
    %834 = vmatprep.subr.mxu0 0.0
    %835 = vmatpush2.msra.mxu0 0.0
    %836 = vmatprep.subr.mxu0 0.0
    %837 = vmatpush2.msra.mxu0 0.0
    %838 = vmatprep.mubr.f32.mxu0 0.0
    %839 = vmatmul.mubr.f32.gmra.mxu0 %v765
    %v840 = vpop.f32.mrf.mxu0
    %v841 = vadd.f32 %v760, %v840
    %v842 = vpop.f32.mrf.mxu0
    %v843 = vadd.f32 %v760, %v842
    %844 = vdwg.mxu0
    %v847 = vcombine.low %v841, %v843
    %v849 = vunpack.c.l.s4 1983009808
    %v850 = vunpack.c.0.s8 %v849
    %v851 = vlaneseq
    %v852 = vshrl.u32 %v851, 7
    %v853 = vsub.s32 %v850, %v852
    %v854 = vrot.slane %v847, %v853
    %856 = vst [vmem:[#allocation7] sm:$0xf] %v854
    // Predicated region
    $region18: #{tpu_custom_call.1} parent=1 // pred_check
      _
    $region19: #{tpu_custom_call.1} parent=1 // pred_check_branch
      %858 = sbr.rel (0) target = $region21
    $region20: #{tpu_custom_call.1} parent=1 // pred_region
      %s860 = ssub.s32 64, 64
      %861 = vsyncadd [#allocation4], %s860
      %s863 = sshll.u32 [#allocation7], 4
      %s864 = int_to_ptr.vmem [resolvable:$true] %s863
      %866 = dma.vmem_to_hbm [thread:$0]  %s864, 64, %s2, [#allocation4]
    $region21: #{tpu_custom_call.1} parent=1 // pred_fallthru
      _
    // Predicated region
    $region22: #{tpu_custom_call.1} parent=1 // pred_check
      _
    $region23: #{tpu_custom_call.1} parent=1 // pred_check_branch
      %868 = sbr.rel (0) target = $region25
    $region24: #{tpu_custom_call.1} parent=1 // pred_region
      %869 = dma.done [#allocation4], 64
    $region25: #{tpu_custom_call.1} parent=1 // pred_fallthru
      _
    %870 = vsyncpa [#allocation3], 1
    %871 = vsyncpa [#allocation6], 1
    %872 = vsyncpa [#allocation4], 1

</llo_original>
